<compile_context>
chip_gen: v6e
topology: v6e:2x2x1
jax: 0.10.0
libtpu: 0.0.40
codegen_flags: <defaults>
</compile_context>

<pallas_src>
import functools

import jax
import jax.numpy as jnp
from jax.experimental import pallas as pl
from jax.experimental.pallas import tpu as pltpu


def _lstmnet_kernel(x_ref, w_ih_t_ref, b_gates_ref, w_fc_ref, b_fc_ref,
                    out_ref, *, hidden_size: int):
    # x: (TB, S)  w_ih_t: (S, 4H)  b_gates: (1, 4H)  w_fc: (1, H)  b_fc: (1,) in SMEM
    H = hidden_size
    x = x_ref[...]

    # Gate pre-activations on the MXU. h0 == 0 so the W_hh term is exactly zero.
    gates = jnp.dot(x, w_ih_t_ref[...], preferred_element_type=jnp.float32)
    gates = gates + b_gates_ref[...]                      # (TB, 4H), broadcast over batch

    # Full-tile activations: 4H == 128 lanes == one f32 vreg, so one sigmoid pass
    # and one tanh pass cover every gate that is actually needed.
    sig = jax.nn.sigmoid(gates)
    th = jnp.tanh(gates)

    i_g = sig[:, 0 * H:1 * H]        # input gate
    g_g = th[:, 2 * H:3 * H]         # cell candidate
    o_g = sig[:, 3 * H:4 * H]        # output gate
    # forget gate omitted entirely: it only multiplies c0 == 0 (seq_len == 1).

    c = i_g * g_g                    # (TB, H)
    h = o_g * jnp.tanh(c)            # (TB, H)

    # Linear head as VPU multiply + lane reduction (no MXU matvec with N == 1).
    out = jnp.sum(h * w_fc_ref[...], axis=-1, keepdims=True)   # (TB, 1)
    out_ref[...] = out + b_fc_ref[0]                           # scalar bias from SMEM


def prepare_params(w_ih, w_hh, b_ih, b_hh, w_fc, b_fc):
    """One-time layout prep, hoisted out of the forward path.

    Returns weights already transposed / fused so the per-call work is exactly
    one pallas_call with no extra XLA glue ops.
    """
    del w_hh  # h0 == 0 => W_hh contributes nothing to this single-step forward
    four_h = w_ih.shape[0]
    w_ih_t = jnp.asarray(w_ih, jnp.float32).T                           # (S, 4H)
    b_gates = (jnp.asarray(b_ih, jnp.float32)
               + jnp.asarray(b_hh, jnp.float32)).reshape(1, four_h)     # (1, 4H)
    w_fc_row = jnp.asarray(w_fc, jnp.float32).reshape(1, -1)            # (1, H)
    b_fc_s = jnp.asarray(b_fc, jnp.float32).reshape(1)                  # (1,) -> SMEM
    return w_ih_t, b_gates, w_fc_row, b_fc_s


def lstmnet_forward(x, prepared):
    """x: (B, state_size) float32, prepared = prepare_params(...). Returns (B, 1)."""
    w_ih_t, b_gates, w_fc_row, b_fc_s = prepared
    B, S = x.shape
    four_h = w_ih_t.shape[1]
    H = four_h // 4

    # Batch tile: whole batch at toy sizes; cap so large batches pipeline over a grid.
    TB = B if B <= 256 else 256
    grid = (pl.cdiv(B, TB),)

    kernel = functools.partial(_lstmnet_kernel, hidden_size=H)

    return pl.pallas_call(
        kernel,
        out_shape=jax.ShapeDtypeStruct((B, 1), jnp.float32),
        grid=grid,
        in_specs=[
            pl.BlockSpec((TB, S), lambda i: (i, 0)),          # x: tiled over batch
            pl.BlockSpec((S, four_h), lambda i: (0, 0)),      # W_ih^T: resident
            pl.BlockSpec((1, four_h), lambda i: (0, 0)),      # fused gate bias
            pl.BlockSpec((1, H), lambda i: (0, 0)),           # W_fc row
            pl.BlockSpec(memory_space=pltpu.MemorySpace.SMEM),  # b_fc scalar
        ],
        out_specs=pl.BlockSpec((TB, 1), lambda i: (i, 0)),
        compiler_params=pltpu.CompilerParams(
            dimension_semantics=("parallel",)),
    )(x.astype(jnp.float32), w_ih_t, b_gates, w_fc_row, b_fc_s)


def _init_params(key, state_size, hidden_size):
    # Deterministic init mimicking PyTorch's U(-1/sqrt(H), 1/sqrt(H)).
    k = 1.0 / jnp.sqrt(jnp.float32(hidden_size))
    keys = jax.random.split(key, 6)
    u = lambda kk, shape: jax.random.uniform(kk, shape, jnp.float32, -k, k)
    w_ih = u(keys[0], (4 * hidden_size, state_size))
    w_hh = u(keys[1], (4 * hidden_size, hidden_size))
    b_ih = u(keys[2], (4 * hidden_size,))
    b_hh = u(keys[3], (4 * hidden_size,))
    w_fc = u(keys[4], (1, hidden_size))
    b_fc = u(keys[5], (1,))
    return w_ih, w_hh, b_ih, b_hh, w_fc, b_fc


def _reference_forward(x, w_ih, w_hh, b_ih, b_hh, w_fc, b_fc):
    H = w_hh.shape[1]
    gates = x @ w_ih.T + b_ih + b_hh          # h0 == 0
    i = jax.nn.sigmoid(gates[:, 0 * H:1 * H])
    g = jnp.tanh(gates[:, 2 * H:3 * H])
    o = jax.nn.sigmoid(gates[:, 3 * H:4 * H])
    c = i * g
    h = o * jnp.tanh(c)
    return h @ w_fc.T + b_fc


if __name__ == "__main__":
    batch, state_size, hidden_size = 8, 16, 32

    key = jax.random.PRNGKey(0)
    kx, kp = jax.random.split(key)
    x = jax.random.normal(kx, (batch, state_size), jnp.float32)
    params = _init_params(kp, state_size, hidden_size)

    prepared = prepare_params(*params)        # one-time layout prep (hoisted glue)
    out = lstmnet_forward(x, prepared)
    out = jax.block_until_ready(out)

    ref = _reference_forward(x, *params)
    assert out.shape == (batch, 1)
    assert jnp.allclose(out, ref, atol=1e-5, rtol=1e-5)

    print("KERNEL_OK")
</pallas_src>

<mosaic_0001>
module attributes {stable_mosaic.version = 11 : i64} {
  func.func @_lstmnet_kernel(%arg0: i32, %arg1: memref<8x16xf32, #tpu.memory_space<vmem>>, %arg2: memref<16x128xf32, #tpu.memory_space<vmem>>, %arg3: memref<1x128xf32, #tpu.memory_space<vmem>>, %arg4: memref<1x32xf32, #tpu.memory_space<vmem>>, %arg5: memref<1xf32, #tpu.memory_space<smem>>, %arg6: memref<8x1xf32, #tpu.memory_space<vmem>>) attributes {dimension_semantics = [#tpu.dimension_semantics<parallel>], iteration_bounds = array<i64: 1>, scalar_prefetch = 0 : i64, scratch_operands = 0 : i64, tpu.core_type = #tpu.core_type<tc>, window_params = [{transform_indices = @transform_0, window_bounds = array<i64: 8, 16>}, {pipeline_mode = #tpu.pipeline_mode<synchronous>, transform_indices = @transform_1, window_bounds = array<i64: 16, 128>}, {pipeline_mode = #tpu.pipeline_mode<synchronous>, transform_indices = @transform_2, window_bounds = array<i64: 1, 128>}, {pipeline_mode = #tpu.pipeline_mode<synchronous>, transform_indices = @transform_3, window_bounds = array<i64: 1, 32>}, {transform_indices = @transform_4, window_bounds = array<i64: 1>}, {transform_indices = @transform_5, window_bounds = array<i64: 8, 1>}]} {
    %c0 = arith.constant 0 : index
    %c0_0 = arith.constant 0 : index
    %0 = vector.load %arg1[%c0, %c0_0] : memref<8x16xf32, #tpu.memory_space<vmem>>, vector<8x16xf32>
    %c0_1 = arith.constant 0 : index
    %c0_2 = arith.constant 0 : index
    %1 = vector.load %arg2[%c0_1, %c0_2] : memref<16x128xf32, #tpu.memory_space<vmem>>, vector<16x128xf32>
    %cst = arith.constant dense<0.000000e+00> : vector<8x128xf32>
    %2 = tpu.matmul %0, %1, %cst {dimension_numbers = #tpu.dot_dimension_numbers<[1], [0], [0], [1], [0, 0, 1, 1], [], []>} : vector<8x16xf32>, vector<16x128xf32>, vector<8x128xf32> -> vector<8x128xf32>
    %c0_3 = arith.constant 0 : index
    %c0_4 = arith.constant 0 : index
    %3 = vector.load %arg3[%c0_3, %c0_4] : memref<1x128xf32, #tpu.memory_space<vmem>>, vector<1x128xf32>
    %4 = vector.broadcast %3 : vector<1x128xf32> to vector<8x128xf32>
    %5 = arith.addf %2, %4 : vector<8x128xf32>
    %6 = arith.negf %5 : vector<8x128xf32>
    %7 = math.exp %6 : vector<8x128xf32>
    %cst_5 = arith.constant 1.000000e+00 : f32
    %8 = vector.broadcast %cst_5 : f32 to vector<8x128xf32>
    %9 = arith.addf %8, %7 : vector<8x128xf32>
    %10 = arith.divf %8, %9 : vector<8x128xf32>
    %11 = math.tanh %5 : vector<8x128xf32>
    %12 = vector.extract_strided_slice %10 {offsets = [0, 0], sizes = [8, 32], strides = [1, 1]} : vector<8x128xf32> to vector<8x32xf32>
    %13 = vector.extract_strided_slice %11 {offsets = [0, 64], sizes = [8, 32], strides = [1, 1]} : vector<8x128xf32> to vector<8x32xf32>
    %14 = vector.extract_strided_slice %10 {offsets = [0, 96], sizes = [8, 32], strides = [1, 1]} : vector<8x128xf32> to vector<8x32xf32>
    %15 = arith.mulf %12, %13 : vector<8x32xf32>
    %16 = math.tanh %15 : vector<8x32xf32>
    %17 = arith.mulf %14, %16 : vector<8x32xf32>
    %c0_6 = arith.constant 0 : index
    %c0_7 = arith.constant 0 : index
    %18 = vector.load %arg4[%c0_6, %c0_7] : memref<1x32xf32, #tpu.memory_space<vmem>>, vector<1x32xf32>
    %19 = vector.broadcast %18 : vector<1x32xf32> to vector<8x32xf32>
    %20 = arith.mulf %17, %19 : vector<8x32xf32>
    %cst_8 = arith.constant dense<0.000000e+00> : vector<8xf32>
    %21 = vector.multi_reduction <add>, %20, %cst_8 [1] : vector<8x32xf32> to vector<8xf32>
    %22 = vector.shape_cast %21 : vector<8xf32> to vector<8x1xf32>
    %c0_9 = arith.constant 0 : index
    %23 = memref.load %arg5[%c0_9] : memref<1xf32, #tpu.memory_space<smem>>
    %24 = vector.broadcast %23 : f32 to vector<8x1xf32>
    %25 = arith.addf %22, %24 : vector<8x1xf32>
    %c0_10 = arith.constant 0 : index
    %c0_11 = arith.constant 0 : index
    %26 = vector.load %arg6[%c0_10, %c0_11] : memref<8x1xf32, #tpu.memory_space<vmem>>, vector<8x1xf32>
    tpu.vector_store %arg6[%c0_10, %c0_11], %25 {strides = array<i32>} : memref<8x1xf32, #tpu.memory_space<vmem>>, vector<8x1xf32>,
    return
  }
  func.func @transform_0(%arg0: i32) -> (i32, i32) {
    %c0_i32 = arith.constant 0 : i32
    %c0_i32_0 = arith.constant 0 : i32
    return %arg0, %c0_i32 : i32, i32
  }
  func.func @transform_1(%arg0: i32) -> (i32, i32) {
    %c0_i32 = arith.constant 0 : i32
    %c0_i32_0 = arith.constant 0 : i32
    %c0_i32_1 = arith.constant 0 : i32
    return %c0_i32, %c0_i32_0 : i32, i32
  }
  func.func @transform_2(%arg0: i32) -> (i32, i32) {
    %c0_i32 = arith.constant 0 : i32
    %c0_i32_0 = arith.constant 0 : i32
    %c0_i32_1 = arith.constant 0 : i32
    return %c0_i32, %c0_i32_0 : i32, i32
  }
  func.func @transform_3(%arg0: i32) -> (i32, i32) {
    %c0_i32 = arith.constant 0 : i32
    %c0_i32_0 = arith.constant 0 : i32
    %c0_i32_1 = arith.constant 0 : i32
    return %c0_i32, %c0_i32_0 : i32, i32
  }
  func.func @transform_4(%arg0: i32) -> i32 {
    %c0_i32 = arith.constant 0 : i32
    %c0_i32_0 = arith.constant 0 : i32
    return %c0_i32 : i32
  }
  func.func @transform_5(%arg0: i32) -> (i32, i32) {
    %c0_i32 = arith.constant 0 : i32
    %c0_i32_0 = arith.constant 0 : i32
    return %arg0, %c0_i32 : i32, i32
  }
}

</mosaic_0001>

<llo_original>
// kernel: tpu_custom_call.1
$region0: #{tpu_custom_call.1}
  #allocation0 [shape = 'u32[]', space=smem, size = 0x4, offset = 0x4, fixed_abs, tag = 'smem constant byte address 0x4 - core index']
  #allocation1 [shape = 'u32[144,128]{1,0:T(1,128)}', space=vmem, size = 0x12000, scoped, tag = 'internal scratch']
  #allocation2 [shape = 'f32[1]{0:T(128)S(6)}', space=smem, size = 0x200, scoped, tag = 'scoped memory for tpu_custom_call.1']
  %s0 = inlined_call_operand.hbm [shape: f32[8,16], index: 0, kind: input, shape index: {}]
  %s1 = inlined_call_operand.hbm [shape: f32[16,128], index: 1, kind: input, shape index: {}]
  %s2 = inlined_call_operand.vmem [shape: f32[1,128], index: 2, kind: input, shape index: {}]
  %s3 = inlined_call_operand.vmem [shape: f32[1,32], index: 3, kind: input, shape index: {}]
  %s4 = inlined_call_operand.<no memory space> [shape: f32[1], index: 4, kind: input, shape index: {}]
  %s5 = inlined_call_operand.vmem [shape: f32[8,1], index: 5, kind: output, shape index: {}]
  %s6 = sld [smem:[#allocation0]]
  $region38: #{tpu_custom_call.1} parent=0
    _
  %s8 = ssub.s32 1, %s6
  %s9 = scalar_select 0, %s8, %s6
  %10 = sst [smem:[#allocation2]] %s4
  $region1: #{tpu_custom_call.1} parent=0
    #allocation3 [shape = 'u8[4096]{0}', space=vmem, size = 0x1000, scoped, tag = 'input window, operand 0, single buffered']
    #allocation4 [shape = 's32[1]{0}', space=sflag, size = 0x4, scoped, tag = 'scoped memory for tpu_custom_call.1']
    #allocation5 [shape = 'u8[8192]{0}', space=vmem, size = 0x2000, scoped, tag = 'input window, operand 1, single buffered']
    #allocation6 [shape = 's32[1]{0}', space=sflag, size = 0x4, scoped, tag = 'scoped memory for tpu_custom_call.1']
    %11 = vsyncpa [#allocation4], 0
    %12 = vsyncpa [#allocation6], 0
    // Predicated region
    $region2: #{tpu_custom_call.1} parent=1 // pred_check
      _
    $region3: #{tpu_custom_call.1} parent=1 // pred_check_branch
      %14 = sbr.rel (0) target = $region5
    $region4: #{tpu_custom_call.1} parent=1 // pred_region
      %s16 = ssub.s32 128, 128
      %17 = vsyncadd [#allocation4], %s16
      %s19 = sshll.u32 [#allocation3], 4
      %s20 = int_to_ptr.vmem [resolvable:$true] %s19
      %22 = dma.hbm_to_vmem [thread:$0]  %s0, 128, %s20, [#allocation4]
    $region5: #{tpu_custom_call.1} parent=1 // pred_fallthru
      _
    // Predicated region
    $region6: #{tpu_custom_call.1} parent=1 // pred_check
      _
    $region7: #{tpu_custom_call.1} parent=1 // pred_check_branch
      %24 = sbr.rel (0) target = $region9
    $region8: #{tpu_custom_call.1} parent=1 // pred_region
      %s26 = ssub.s32 256, 256
      %27 = vsyncadd [#allocation6], %s26
      %s28 = sshll.u32 [#allocation5], 4
      %s29 = int_to_ptr.vmem [resolvable:$true] %s28
      %34 = dma.hbm_to_vmem [thread:$0]  %s1, 256, %s29, [#allocation6], 128, 128, 8
    $region9: #{tpu_custom_call.1} parent=1 // pred_fallthru
      _
    // Predicated region
    $region10: #{tpu_custom_call.1} parent=1 // pred_check
      _
    $region11: #{tpu_custom_call.1} parent=1 // pred_check_branch
      %36 = sbr.rel (0) target = $region13
    $region12: #{tpu_custom_call.1} parent=1 // pred_region
      _
    $region13: #{tpu_custom_call.1} parent=1 // pred_fallthru
      _
    // Predicated region
    $region14: #{tpu_custom_call.1} parent=1 // pred_check
      _
    $region15: #{tpu_custom_call.1} parent=1 // pred_check_branch
      %38 = sbr.rel (0) target = $region17
    $region16: #{tpu_custom_call.1} parent=1 // pred_region
      _
    $region17: #{tpu_custom_call.1} parent=1 // pred_fallthru
      _
    // Predicated region
    $region18: #{tpu_custom_call.1} parent=1 // pred_check
      _
    $region19: #{tpu_custom_call.1} parent=1 // pred_check_branch
      %40 = sbr.rel (0) target = $region21
    $region20: #{tpu_custom_call.1} parent=1 // pred_region
      _
    $region21: #{tpu_custom_call.1} parent=1 // pred_fallthru
      _
    // Predicated region
    $region22: #{tpu_custom_call.1} parent=1 // pred_check
      _
    $region23: #{tpu_custom_call.1} parent=1 // pred_check_branch
      %42 = sbr.rel (0) target = $region25
    $region24: #{tpu_custom_call.1} parent=1 // pred_region
      %43 = dma.done [#allocation4], 128
    $region25: #{tpu_custom_call.1} parent=1 // pred_fallthru
      _
    // Predicated region
    $region26: #{tpu_custom_call.1} parent=1 // pred_check
      _
    $region27: #{tpu_custom_call.1} parent=1 // pred_check_branch
      %45 = sbr.rel (0) target = $region29
    $region28: #{tpu_custom_call.1} parent=1 // pred_region
      %46 = dma.done [#allocation6], 256
    $region29: #{tpu_custom_call.1} parent=1 // pred_fallthru
      _
    %v47 = vld [vmem:[#allocation3] sm:$0xff]
    %v48 = vld [vmem:[#allocation5] sm:$0xff]
    %v49 = vld [vmem:[#allocation5 + $0x8] sm:$0xff]
    %v50 = vld [vmem:[%s2] sm:$0x1]
    %v52 = vlaneseq
    %v53 = vshrl.u32 %v52, 7
    %v54 = vsub.s32 0, %v53
    %v55 = vrot.slane %v50, %v54
    %vm57 = vcmask 130048
    %v59 = vsel %vm57, %v47, 0
    %61 = vmatprep.subr.mxu0 0.0
    %62 = vmatpush1.msra.mxu0 0.0
    %63 = vmatprep.subr.mxu0 0.0
    %64 = vmatpush1.msra.mxu0 0.0
    %65 = vmatprep.subr.mxu0 0.0
    %66 = vmatpush1.msra.mxu0 0.0
    %67 = vmatprep.subr.mxu0 0.0
    %68 = vmatpush1.msra.mxu0 0.0
    %69 = vmatprep.subr.mxu0 0.0
    %70 = vmatpush1.msra.mxu0 0.0
    %71 = vmatprep.subr.mxu0 0.0
    %72 = vmatpush1.msra.mxu0 0.0
    %73 = vmatprep.subr.mxu0 0.0
    %74 = vmatpush1.msra.mxu0 0.0
    %75 = vmatprep.subr.mxu0 0.0
    %76 = vmatpush1.msra.mxu0 0.0
    %77 = vmatprep.subr.mxu0 0.0
    %78 = vmatpush1.msra.mxu0 0.0
    %79 = vmatprep.subr.mxu0 0.0
    %80 = vmatpush1.msra.mxu0 0.0
    %81 = vmatprep.subr.mxu0 0.0
    %82 = vmatpush1.msra.mxu0 0.0
    %83 = vmatprep.subr.mxu0 0.0
    %84 = vmatpush1.msra.mxu0 0.0
    %85 = vmatprep.subr.mxu0 0.0
    %86 = vmatpush1.msra.mxu0 0.0
    %87 = vmatprep.subr.mxu0 0.0
    %88 = vmatpush1.msra.mxu0 0.0
    %89 = vmatprep.subr.mxu0 0.0
    %90 = vmatpush1.msra.mxu0 %v49
    %91 = vmatprep.subr.mxu0 0.0
    %92 = vmatpush1.msra.mxu0 %v48
    %93 = vmatprep.subr.mxu0 0.0
    %94 = vmatpush2.msra.mxu0 0.0
    %95 = vmatprep.subr.mxu0 0.0
    %96 = vmatpush2.msra.mxu0 0.0
    %97 = vmatprep.subr.mxu0 0.0
    %98 = vmatpush2.msra.mxu0 0.0
    %99 = vmatprep.subr.mxu0 0.0
    %100 = vmatpush2.msra.mxu0 0.0
    %101 = vmatprep.subr.mxu0 0.0
    %102 = vmatpush2.msra.mxu0 0.0
    %103 = vmatprep.subr.mxu0 0.0
    %104 = vmatpush2.msra.mxu0 0.0
    %105 = vmatprep.subr.mxu0 0.0
    %106 = vmatpush2.msra.mxu0 0.0
    %107 = vmatprep.subr.mxu0 0.0
    %108 = vmatpush2.msra.mxu0 0.0
    %109 = vmatprep.subr.mxu0 0.0
    %110 = vmatpush2.msra.mxu0 0.0
    %111 = vmatprep.subr.mxu0 0.0
    %112 = vmatpush2.msra.mxu0 0.0
    %113 = vmatprep.subr.mxu0 0.0
    %114 = vmatpush2.msra.mxu0 0.0
    %115 = vmatprep.subr.mxu0 0.0
    %116 = vmatpush2.msra.mxu0 0.0
    %117 = vmatprep.subr.mxu0 0.0
    %118 = vmatpush2.msra.mxu0 0.0
    %119 = vmatprep.subr.mxu0 0.0
    %120 = vmatpush2.msra.mxu0 0.0
    %121 = vmatprep.subr.mxu0 0.0
    %122 = vmatpush2.msra.mxu0 0.0
    %123 = vmatprep.subr.mxu0 0.0
    %124 = vmatpush2.msra.mxu0 0.0
    %125 = vmatprep.mubr.f32.mxu0 0.0
    %126 = vmatmul.mubr.f32.gmra.mxu0 %v59
    %v127 = vpop.f32.mrf.mxu0
    %v128 = vadd.f32 %v55, %v127
    %v129 = vpop.f32.mrf.mxu0
    %130 = vdwg.mxu0
    %v131 = vxor.u32 %v128, 2147483648
    %v132 = vmul.f32 %v131, 1.442695
    %v133 = vpow.pop %v132
    %v134 = vadd.f32 %v133, 1.0
    %v135 = vrcp.pop %v134
    %v136 = vmul.f32 1.0, %v135
    %v137 = vtanh.pop %v128
    %139 = vrot.lane.b32.xlu0 %v137, 64
    %v140 = vpop.permute.xlu0 %139
    %v142 = vmul.f32 %v136, %v140
    %v143 = vtanh.pop %v142
    %145 = vrot.lane.b32.xlu0 %v143, 96
    %v146 = vpop.permute.xlu0 %145
    %v148 = vmul.f32 %v136, %v146
    %v149 = vld [vmem:[%s3] sm:$0x1]
    %v151 = vlaneseq
    %v152 = vshrl.u32 %v151, 7
    %v153 = vsub.s32 0, %v152
    %v154 = vrot.slane %v149, %v153
    %155 = vrot.lane.b32.xlu0 %v154, 96
    %v156 = vpop.permute.xlu0 %155
    %v158 = vmul.f32 %v148, %v156
    %160 = vrot.lane.b32.xlu0 %v158, 32
    %v161 = vpop.permute.xlu0 %160
    %vm163 = vcmask 261120
    %v164 = vsel %vm163, %v161, 0.0
    %165 = vadd.xlane.f32.xlu0 %v164
    %v166 = vpop.xlane.xlu0 %165
    %s167 = sld [smem:[#allocation2]]
    %v168 = vstv %s167
    %v169 = vadd.f32 %v166, %v168
    %vm170 = vcmask 7168
    %171 = vst.msk [vmem:[%s5] sm:$0xff] %vm170, %v169
    // Predicated region
    $region30: #{tpu_custom_call.1} parent=1 // pred_check
      _
    $region31: #{tpu_custom_call.1} parent=1 // pred_check_branch
      %173 = sbr.rel (0) target = $region33
    $region32: #{tpu_custom_call.1} parent=1 // pred_region
      _
    $region33: #{tpu_custom_call.1} parent=1 // pred_fallthru
      _
    // Predicated region
    $region34: #{tpu_custom_call.1} parent=1 // pred_check
      _
    $region35: #{tpu_custom_call.1} parent=1 // pred_check_branch
      %175 = sbr.rel (0) target = $region37
    $region36: #{tpu_custom_call.1} parent=1 // pred_region
      _
    $region37: #{tpu_custom_call.1} parent=1 // pred_fallthru
      _
    %176 = vsyncpa [#allocation4], 1
    %177 = vsyncpa [#allocation6], 1

</llo_original>
